<compile_context>
chip_gen: v5e
topology: v5e:2x2
jax: 0.10.0
libtpu: 0.0.40
codegen_flags: <defaults>
</compile_context>

<pallas_src>
import math
import numpy as np
import jax
import jax.numpy as jnp
from jax.experimental import pallas as pl
from jax.experimental.pallas import tpu as pltpu


# ------------------------------- Pallas kernel -------------------------------

def _bn_vq_kernel(x_ref, scale_ref, shift_ref, cb_ref, cn2_ref,
                  codes_ref, idx_ref):
    # x_ref:     (TN, D)   row tile of flattened inputs
    # scale_ref: (1, D)    folded BatchNorm scale  (weight / sqrt(var + eps))
    # shift_ref: (1, D)    folded BatchNorm shift  (bias - mean * scale)
    # cb_ref:    (NC, D)   codebook (grid-invariant)
    # cn2_ref:   (1, NC)   per-code squared norms ||c||^2 (grid-invariant)
    # codes_ref: (TN, D)   quantized outputs
    # idx_ref:   (TN, 1)   nearest-code indices (int32)
    xb = x_ref[...] * scale_ref[...] + shift_ref[...]            # BatchNorm (eval)

    # x . c^T on the MXU, f32 accumulation.
    dots = jax.lax.dot_general(
        xb, cb_ref[...],
        (((1,), (1,)), ((), ())),
        preferred_element_type=jnp.float32)                      # (TN, NC)

    # Squared distance up to the row-constant ||x||^2 term.
    dist = cn2_ref[...] - 2.0 * dots                             # (TN, NC)

    nc = cb_ref.shape[0]
    iota = jax.lax.broadcasted_iota(jnp.int32, dist.shape, 1)
    dmin = jnp.min(dist, axis=-1, keepdims=True)
    # First index attaining the minimum (matches torch.min tie-breaking).
    idx = jnp.min(jnp.where(dist == dmin, iota, nc),
                  axis=-1, keepdims=True)                        # (TN, 1) int32
    idx_ref[...] = idx

    # Gather codebook[idx] as a one-hot matmul (MXU-friendly, no dynamic gather).
    onehot = (iota == idx).astype(jnp.float32)                   # (TN, NC)
    codes_ref[...] = jnp.dot(onehot, cb_ref[...],
                             preferred_element_type=jnp.float32
                             ).astype(codes_ref.dtype)


# --------------------------------- wrapper -----------------------------------

def robust_kmeans_quantizer_forward(x, codebook, bn_scale, bn_shift,
                                    *, enforce_quantization=True,
                                    row_tile=128):
    """Forward of RobustKMeansQuantizer (inference).

    x:         (bs, l, d) float32
    codebook:  (numCodes, codeDim) with codeDim == d
    bn_scale:  (d,)  = bn.weight / sqrt(bn.running_var + eps)
    bn_shift:  (d,)  = bn.bias - bn.running_mean * bn_scale
    Returns (codes (bs, l, d), indices (bs, l, 1) int32).
    """
    bs, l, d = x.shape
    nc, cd = codebook.shape
    assert cd == d, "codeDim must equal the input feature dim for cdist"

    if not enforce_quantization:
        # Pass-through branch (Globals.epoch < quantizationEnforceFromEpoch):
        # codes = BN(x), indices = zeros. Trivially elementwise -> plain JAX.
        codes = x * bn_scale.reshape(1, 1, d) + bn_shift.reshape(1, 1, d)
        idx = jnp.zeros((bs, l, 1), jnp.int32)
        return codes, idx

    n = bs * l
    tn = int(row_tile)
    n_pad = int(pl.cdiv(n, tn)) * tn

    xf = x.reshape(n, d)
    if n_pad != n:
        # Pad rows (quantizing pad rows is harmless; they are sliced off below).
        xf = jnp.pad(xf, ((0, n_pad - n), (0, 0)))

    cn2 = jnp.sum(codebook * codebook, axis=-1).reshape(1, nc)   # (1, NC)
    scale2d = bn_scale.reshape(1, d).astype(jnp.float32)
    shift2d = bn_shift.reshape(1, d).astype(jnp.float32)

    codes_flat, idx_flat = pl.pallas_call(
        _bn_vq_kernel,
        out_shape=(
            jax.ShapeDtypeStruct((n_pad, d), x.dtype),
            jax.ShapeDtypeStruct((n_pad, 1), jnp.int32),
        ),
        grid_spec=pltpu.PrefetchScalarGridSpec(
            num_scalar_prefetch=0,
            grid=(n_pad // tn,),
            in_specs=[
                pl.BlockSpec((tn, d), lambda i: (i, 0)),   # x row tile
                pl.BlockSpec((1, d), lambda i: (0, 0)),    # bn scale
                pl.BlockSpec((1, d), lambda i: (0, 0)),    # bn shift
                pl.BlockSpec((nc, d), lambda i: (0, 0)),   # codebook
                pl.BlockSpec((1, nc), lambda i: (0, 0)),   # ||c||^2
            ],
            out_specs=[
                pl.BlockSpec((tn, d), lambda i: (i, 0)),   # codes
                pl.BlockSpec((tn, 1), lambda i: (i, 0)),   # indices
            ],
        ),
        compiler_params=pltpu.CompilerParams(
            dimension_semantics=("parallel",)),
    )(xf, scale2d, shift2d, codebook, cn2)

    codes = codes_flat[:n].reshape(bs, l, d)
    idx = idx_flat[:n].reshape(bs, l, 1)
    # TODO(synk): PyTorch returns int64 indices; int32 is used here (TPU-native).
    # TODO(synk): training-mode batch-stat BN, reservoir sampling, sklearn
    #             k-means re-estimation, tensorboard logging and enc_len
    #             pack/unpack are host/training-side and not expressible here.
    return codes, idx


# ----------------------------------- main ------------------------------------

if __name__ == "__main__":
    # Small shapes consistent with the module: dim == codeDim, a modest codebook.
    bs, l, dim, num_codes = 2, 8, 32, 64
    eps = 1e-5

    key = jax.random.PRNGKey(0)
    kx, kc, kw, kb, km, kv = jax.random.split(key, 6)

    x = jax.random.normal(kx, (bs, l, dim), dtype=jnp.float32)
    # xavier_uniform-ish codebook init.
    codebook = jax.random.normal(kc, (num_codes, dim), dtype=jnp.float32)
    codebook = codebook * (1.0 / math.sqrt(dim))

    # BatchNorm1d parameters + running stats (eval mode -> folded scale/shift).
    bn_weight = 1.0 + 0.1 * jax.random.normal(kw, (dim,), dtype=jnp.float32)
    bn_bias = 0.1 * jax.random.normal(kb, (dim,), dtype=jnp.float32)
    running_mean = 0.1 * jax.random.normal(km, (dim,), dtype=jnp.float32)
    running_var = jnp.abs(1.0 + 0.1 * jax.random.normal(kv, (dim,),
                                                        dtype=jnp.float32))
    bn_scale = bn_weight / jnp.sqrt(running_var + eps)
    bn_shift = bn_bias - running_mean * bn_scale

    codes, indices = robust_kmeans_quantizer_forward(
        x, codebook, bn_scale, bn_shift, enforce_quantization=True)
    codes = jax.block_until_ready(codes)
    indices = jax.block_until_ready(indices)

    # Pure-JAX/numpy reference (same math as the PyTorch forward in eval mode).
    xb_ref = np.asarray(x).reshape(-1, dim) * np.asarray(bn_scale) \
        + np.asarray(bn_shift)
    cb_np = np.asarray(codebook)
    d2 = ((xb_ref[:, None, :] - cb_np[None, :, :]) ** 2).sum(-1)
    idx_ref = np.argmin(d2, axis=-1)
    codes_ref = cb_np[idx_ref].reshape(bs, l, dim)

    np.testing.assert_array_equal(np.asarray(indices).reshape(-1), idx_ref)
    np.testing.assert_allclose(np.asarray(codes), codes_ref,
                               rtol=1e-5, atol=1e-5)

    print("KERNEL_OK")
</pallas_src>

<mosaic_0001>
module attributes {stable_mosaic.version = 11 : i64} {
  func.func @_bn_vq_kernel(%arg0: i32, %arg1: memref<128x32xf32, #tpu.memory_space<vmem>>, %arg2: memref<1x32xf32, #tpu.memory_space<vmem>>, %arg3: memref<1x32xf32, #tpu.memory_space<vmem>>, %arg4: memref<64x32xf32, #tpu.memory_space<vmem>>, %arg5: memref<1x64xf32, #tpu.memory_space<vmem>>, %arg6: memref<128x32xf32, #tpu.memory_space<vmem>>, %arg7: memref<128x1xi32, #tpu.memory_space<vmem>>) attributes {dimension_semantics = [#tpu.dimension_semantics<parallel>], iteration_bounds = array<i64: 1>, scalar_prefetch = 0 : i64, scratch_operands = 0 : i64, tpu.core_type = #tpu.core_type<tc>, window_params = [{transform_indices = @transform_0, window_bounds = array<i64: 128, 32>}, {pipeline_mode = #tpu.pipeline_mode<synchronous>, transform_indices = @transform_1, window_bounds = array<i64: 1, 32>}, {pipeline_mode = #tpu.pipeline_mode<synchronous>, transform_indices = @transform_2, window_bounds = array<i64: 1, 32>}, {pipeline_mode = #tpu.pipeline_mode<synchronous>, transform_indices = @transform_3, window_bounds = array<i64: 64, 32>}, {pipeline_mode = #tpu.pipeline_mode<synchronous>, transform_indices = @transform_4, window_bounds = array<i64: 1, 64>}, {transform_indices = @transform_5, window_bounds = array<i64: 128, 32>}, {transform_indices = @transform_6, window_bounds = array<i64: 128, 1>}]} {
    %c0 = arith.constant 0 : index
    %c0_0 = arith.constant 0 : index
    %0 = vector.load %arg1[%c0, %c0_0] : memref<128x32xf32, #tpu.memory_space<vmem>>, vector<128x32xf32>
    %c0_1 = arith.constant 0 : index
    %c0_2 = arith.constant 0 : index
    %1 = vector.load %arg2[%c0_1, %c0_2] : memref<1x32xf32, #tpu.memory_space<vmem>>, vector<1x32xf32>
    %2 = vector.broadcast %1 : vector<1x32xf32> to vector<128x32xf32>
    %3 = arith.mulf %0, %2 : vector<128x32xf32>
    %c0_3 = arith.constant 0 : index
    %c0_4 = arith.constant 0 : index
    %4 = vector.load %arg3[%c0_3, %c0_4] : memref<1x32xf32, #tpu.memory_space<vmem>>, vector<1x32xf32>
    %5 = vector.broadcast %4 : vector<1x32xf32> to vector<128x32xf32>
    %6 = arith.addf %3, %5 : vector<128x32xf32>
    %c0_5 = arith.constant 0 : index
    %c0_6 = arith.constant 0 : index
    %7 = vector.load %arg4[%c0_5, %c0_6] : memref<64x32xf32, #tpu.memory_space<vmem>>, vector<64x32xf32>
    %cst = arith.constant dense<0.000000e+00> : vector<128x64xf32>
    %8 = tpu.matmul %6, %7, %cst {dimension_numbers = #tpu.dot_dimension_numbers<[1], [1], [0], [0], [0, 0, 1, 0], [], []>} : vector<128x32xf32>, vector<64x32xf32>, vector<128x64xf32> -> vector<128x64xf32>
    %c0_7 = arith.constant 0 : index
    %c0_8 = arith.constant 0 : index
    %9 = vector.load %arg5[%c0_7, %c0_8] : memref<1x64xf32, #tpu.memory_space<vmem>>, vector<1x64xf32>
    %cst_9 = arith.constant 2.000000e+00 : f32
    %10 = vector.broadcast %cst_9 : f32 to vector<128x64xf32>
    %11 = arith.mulf %10, %8 : vector<128x64xf32>
    %12 = vector.broadcast %9 : vector<1x64xf32> to vector<128x64xf32>
    %13 = arith.subf %12, %11 : vector<128x64xf32>
    %14 = tpu.iota {dimensions = array<i32: 1>} : vector<128x64xi32>
    %cst_10 = arith.constant dense<0x7F800000> : vector<128xf32>
    %15 = vector.multi_reduction <minimumf>, %13, %cst_10 [1] : vector<128x64xf32> to vector<128xf32>
    %16 = vector.shape_cast %15 : vector<128xf32> to vector<128x1xf32>
    %17 = vector.broadcast %16 : vector<128x1xf32> to vector<128x64xf32>
    %18 = arith.cmpf oeq, %13, %17 : vector<128x64xf32>
    %c64_i32 = arith.constant 64 : i32
    %19 = vector.broadcast %c64_i32 : i32 to vector<128x64xi32>
    %20 = arith.select %18, %14, %19 : vector<128x64xi1>, vector<128x64xi32>
    %cst_11 = arith.constant dense<2147483647> : vector<128xi32>
    %21 = vector.multi_reduction <minsi>, %20, %cst_11 [1] : vector<128x64xi32> to vector<128xi32>
    %22 = vector.shape_cast %21 : vector<128xi32> to vector<128x1xi32>
    %c0_12 = arith.constant 0 : index
    %c0_13 = arith.constant 0 : index
    %23 = vector.load %arg7[%c0_12, %c0_13] : memref<128x1xi32, #tpu.memory_space<vmem>>, vector<128x1xi32>
    tpu.vector_store %arg7[%c0_12, %c0_13], %22 {strides = array<i32>} : memref<128x1xi32, #tpu.memory_space<vmem>>, vector<128x1xi32>,
    %24 = vector.broadcast %22 : vector<128x1xi32> to vector<128x64xi32>
    %25 = arith.cmpi eq, %14, %24 : vector<128x64xi32>
    %26 = arith.extui %25 : vector<128x64xi1> to vector<128x64xi32>
    %27 = arith.sitofp %26 : vector<128x64xi32> to vector<128x64xf32>
    %c0_14 = arith.constant 0 : index
    %c0_15 = arith.constant 0 : index
    %28 = vector.load %arg4[%c0_14, %c0_15] : memref<64x32xf32, #tpu.memory_space<vmem>>, vector<64x32xf32>
    %cst_16 = arith.constant dense<0.000000e+00> : vector<128x32xf32>
    %29 = tpu.matmul %27, %28, %cst_16 {dimension_numbers = #tpu.dot_dimension_numbers<[1], [0], [0], [1], [0, 0, 1, 1], [], []>} : vector<128x64xf32>, vector<64x32xf32>, vector<128x32xf32> -> vector<128x32xf32>
    %c0_17 = arith.constant 0 : index
    %c0_18 = arith.constant 0 : index
    %30 = vector.load %arg6[%c0_17, %c0_18] : memref<128x32xf32, #tpu.memory_space<vmem>>, vector<128x32xf32>
    tpu.vector_store %arg6[%c0_17, %c0_18], %29 {strides = array<i32>} : memref<128x32xf32, #tpu.memory_space<vmem>>, vector<128x32xf32>,
    return
  }
  func.func @transform_0(%arg0: i32) -> (i32, i32) {
    %c0_i32 = arith.constant 0 : i32
    %c0_i32_0 = arith.constant 0 : i32
    return %arg0, %c0_i32 : i32, i32
  }
  func.func @transform_1(%arg0: i32) -> (i32, i32) {
    %c0_i32 = arith.constant 0 : i32
    %c0_i32_0 = arith.constant 0 : i32
    %c0_i32_1 = arith.constant 0 : i32
    return %c0_i32, %c0_i32_0 : i32, i32
  }
  func.func @transform_2(%arg0: i32) -> (i32, i32) {
    %c0_i32 = arith.constant 0 : i32
    %c0_i32_0 = arith.constant 0 : i32
    %c0_i32_1 = arith.constant 0 : i32
    return %c0_i32, %c0_i32_0 : i32, i32
  }
  func.func @transform_3(%arg0: i32) -> (i32, i32) {
    %c0_i32 = arith.constant 0 : i32
    %c0_i32_0 = arith.constant 0 : i32
    %c0_i32_1 = arith.constant 0 : i32
    return %c0_i32, %c0_i32_0 : i32, i32
  }
  func.func @transform_4(%arg0: i32) -> (i32, i32) {
    %c0_i32 = arith.constant 0 : i32
    %c0_i32_0 = arith.constant 0 : i32
    %c0_i32_1 = arith.constant 0 : i32
    return %c0_i32, %c0_i32_0 : i32, i32
  }
  func.func @transform_5(%arg0: i32) -> (i32, i32) {
    %c0_i32 = arith.constant 0 : i32
    %c0_i32_0 = arith.constant 0 : i32
    return %arg0, %c0_i32 : i32, i32
  }
  func.func @transform_6(%arg0: i32) -> (i32, i32) {
    %c0_i32 = arith.constant 0 : i32
    %c0_i32_0 = arith.constant 0 : i32
    return %arg0, %c0_i32 : i32, i32
  }
}

</mosaic_0001>

<llo_original>
// kernel: tpu_custom_call.1
$region0: #{tpu_custom_call.1}
  #allocation0 [shape = 'u32[]', space=smem, size = 0x4, offset = 0x4, fixed_abs, tag = 'smem constant byte address 0x4 - core index']
  #allocation1 [shape = 'u32[72,128]{1,0:T(1,128)}', space=vmem, size = 0x9000, scoped, tag = 'internal scratch']
  %s0 = inlined_call_operand.vmem [shape: f32[128,32], index: 0, kind: input, shape index: {}]
  %s1 = inlined_call_operand.vmem [shape: f32[1,32], index: 1, kind: input, shape index: {}]
  %s2 = inlined_call_operand.vmem [shape: f32[1,32], index: 2, kind: input, shape index: {}]
  %s3 = inlined_call_operand.vmem [shape: f32[64,32], index: 3, kind: input, shape index: {}]
  %s4 = inlined_call_operand.vmem [shape: f32[1,64], index: 4, kind: input, shape index: {}]
  %s5 = inlined_call_operand.vmem [shape: f32[128,32], index: 5, kind: output, shape index: {0}]
  %s6 = inlined_call_operand.vmem [shape: s32[128,1], index: 6, kind: output, shape index: {1}]
  %7 = xla_tuple %s5, %s6
  %s8 = sld [smem:[#allocation0]]
  $region38: #{tpu_custom_call.1} parent=0
    _
  %s10 = ssub.s32 1, %s8
  %s11 = scalar_select 0, %s10, %s8
  // Predicated region
  $region2: #{tpu_custom_call.1} parent=0 // pred_check
    _
  $region3: #{tpu_custom_call.1} parent=0 // pred_check_branch
    %13 = sbr.rel (0) target = $region5
  $region4: #{tpu_custom_call.1} parent=0 // pred_region
    _
  $region5: #{tpu_custom_call.1} parent=0 // pred_fallthru
    _
  // Predicated region
  $region6: #{tpu_custom_call.1} parent=0 // pred_check
    _
  $region7: #{tpu_custom_call.1} parent=0 // pred_check_branch
    %15 = sbr.rel (0) target = $region9
  $region8: #{tpu_custom_call.1} parent=0 // pred_region
    _
  $region9: #{tpu_custom_call.1} parent=0 // pred_fallthru
    _
  // Predicated region
  $region10: #{tpu_custom_call.1} parent=0 // pred_check
    _
  $region11: #{tpu_custom_call.1} parent=0 // pred_check_branch
    %17 = sbr.rel (0) target = $region13
  $region12: #{tpu_custom_call.1} parent=0 // pred_region
    _
  $region13: #{tpu_custom_call.1} parent=0 // pred_fallthru
    _
  // Predicated region
  $region14: #{tpu_custom_call.1} parent=0 // pred_check
    _
  $region15: #{tpu_custom_call.1} parent=0 // pred_check_branch
    %19 = sbr.rel (0) target = $region17
  $region16: #{tpu_custom_call.1} parent=0 // pred_region
    _
  $region17: #{tpu_custom_call.1} parent=0 // pred_fallthru
    _
  // Predicated region
  $region18: #{tpu_custom_call.1} parent=0 // pred_check
    _
  $region19: #{tpu_custom_call.1} parent=0 // pred_check_branch
    %21 = sbr.rel (0) target = $region21
  $region20: #{tpu_custom_call.1} parent=0 // pred_region
    _
  $region21: #{tpu_custom_call.1} parent=0 // pred_fallthru
    _
  %v22 = vld [vmem:[%s0] sm:$0xff]
  %v23 = vld [vmem:[%s0 + $0x8] sm:$0xff]
  %v24 = vld [vmem:[%s0 + $0x10] sm:$0xff]
  %v25 = vld [vmem:[%s0 + $0x18] sm:$0xff]
  %v26 = vld [vmem:[%s0 + $0x20] sm:$0xff]
  %v27 = vld [vmem:[%s0 + $0x28] sm:$0xff]
  %v28 = vld [vmem:[%s0 + $0x30] sm:$0xff]
  %v29 = vld [vmem:[%s0 + $0x38] sm:$0xff]
  %v30 = vld [vmem:[%s0 + $0x40] sm:$0xff]
  %v31 = vld [vmem:[%s0 + $0x48] sm:$0xff]
  %v32 = vld [vmem:[%s0 + $0x50] sm:$0xff]
  %v33 = vld [vmem:[%s0 + $0x58] sm:$0xff]
  %v34 = vld [vmem:[%s0 + $0x60] sm:$0xff]
  %v35 = vld [vmem:[%s0 + $0x68] sm:$0xff]
  %v36 = vld [vmem:[%s0 + $0x70] sm:$0xff]
  %v37 = vld [vmem:[%s0 + $0x78] sm:$0xff]
  %v38 = vld [vmem:[%s1] sm:$0x1]
  %v40 = vperm.slane %v38, 0
  %v42 = vmul.f32 %v22, %v40
  %v43 = vmul.f32 %v23, %v40
  %v44 = vmul.f32 %v24, %v40
  %v45 = vmul.f32 %v25, %v40
  %v46 = vmul.f32 %v26, %v40
  %v47 = vmul.f32 %v27, %v40
  %v48 = vmul.f32 %v28, %v40
  %v49 = vmul.f32 %v29, %v40
  %v50 = vmul.f32 %v30, %v40
  %v51 = vmul.f32 %v31, %v40
  %v52 = vmul.f32 %v32, %v40
  %v53 = vmul.f32 %v33, %v40
  %v54 = vmul.f32 %v34, %v40
  %v55 = vmul.f32 %v35, %v40
  %v56 = vmul.f32 %v36, %v40
  %v57 = vmul.f32 %v37, %v40
  %v58 = vld [vmem:[%s2] sm:$0x1]
  %v60 = vperm.slane %v58, 0
  %v62 = vadd.f32 %v42, %v60
  %v63 = vadd.f32 %v43, %v60
  %v64 = vadd.f32 %v44, %v60
  %v65 = vadd.f32 %v45, %v60
  %v66 = vadd.f32 %v46, %v60
  %v67 = vadd.f32 %v47, %v60
  %v68 = vadd.f32 %v48, %v60
  %v69 = vadd.f32 %v49, %v60
  %v70 = vadd.f32 %v50, %v60
  %v71 = vadd.f32 %v51, %v60
  %v72 = vadd.f32 %v52, %v60
  %v73 = vadd.f32 %v53, %v60
  %v74 = vadd.f32 %v54, %v60
  %v75 = vadd.f32 %v55, %v60
  %v76 = vadd.f32 %v56, %v60
  %v77 = vadd.f32 %v57, %v60
  %v78 = vld [vmem:[%s3] sm:$0xff]
  %v79 = vld [vmem:[%s3 + $0x8] sm:$0xff]
  %v80 = vld [vmem:[%s3 + $0x10] sm:$0xff]
  %v81 = vld [vmem:[%s3 + $0x18] sm:$0xff]
  %v82 = vld [vmem:[%s3 + $0x20] sm:$0xff]
  %v83 = vld [vmem:[%s3 + $0x28] sm:$0xff]
  %v84 = vld [vmem:[%s3 + $0x30] sm:$0xff]
  %v85 = vld [vmem:[%s3 + $0x38] sm:$0xff]
  %vm86 = vcmask 261120
  %v88 = vsel %vm86, %v62, 0
  %v91 = vsel %vm86, %v63, 0
  %v94 = vsel %vm86, %v64, 0
  %v97 = vsel %vm86, %v65, 0
  %v100 = vsel %vm86, %v66, 0
  %v103 = vsel %vm86, %v67, 0
  %v106 = vsel %vm86, %v68, 0
  %v109 = vsel %vm86, %v69, 0
  %v112 = vsel %vm86, %v70, 0
  %v115 = vsel %vm86, %v71, 0
  %v118 = vsel %vm86, %v72, 0
  %v121 = vsel %vm86, %v73, 0
  %v124 = vsel %vm86, %v74, 0
  %v127 = vsel %vm86, %v75, 0
  %v130 = vsel %vm86, %v76, 0
  %v133 = vsel %vm86, %v77, 0
  %v136 = vsel %vm86, %v78, 0
  %v139 = vsel %vm86, %v79, 0
  %v142 = vsel %vm86, %v80, 0
  %v145 = vsel %vm86, %v81, 0
  %v148 = vsel %vm86, %v82, 0
  %v151 = vsel %vm86, %v83, 0
  %v154 = vsel %vm86, %v84, 0
  %v157 = vsel %vm86, %v85, 0
  %159 = vmatpush.xpose.msra.mxu0 0.0
  %160 = vmatpush.xpose.msra.mxu0 0.0
  %161 = vmatpush.xpose.msra.mxu0 0.0
  %162 = vmatpush.xpose.msra.mxu0 0.0
  %163 = vmatpush.xpose.msra.mxu0 0.0
  %164 = vmatpush.xpose.msra.mxu0 0.0
  %165 = vmatpush.xpose.msra.mxu0 0.0
  %166 = vmatpush.xpose.msra.mxu0 0.0
  %167 = vmatpush.xpose.msra.mxu0 %v157
  %168 = vmatpush.xpose.msra.mxu0 %v154
  %169 = vmatpush.xpose.msra.mxu0 %v151
  %170 = vmatpush.xpose.msra.mxu0 %v148
  %171 = vmatpush.xpose.msra.mxu0 %v145
  %172 = vmatpush.xpose.msra.mxu0 %v142
  %173 = vmatpush.xpose.msra.mxu0 %v139
  %174 = vmatpush.xpose.msra.mxu0 %v136
  %175 = vmatmul.f32.gmra.mxu0 %v88
  %v176 = vpop.f32.mrf.mxu0
  %v177 = vadd.f32 0.0, %v176
  %178 = vmatmul.f32.gmra.mxu0 %v91
  %v179 = vpop.f32.mrf.mxu0
  %v180 = vadd.f32 0.0, %v179
  %181 = vmatmul.f32.gmra.mxu0 %v94
  %v182 = vpop.f32.mrf.mxu0
  %v183 = vadd.f32 0.0, %v182
  %184 = vmatmul.f32.gmra.mxu0 %v97
  %v185 = vpop.f32.mrf.mxu0
  %v186 = vadd.f32 0.0, %v185
  %187 = vmatmul.f32.gmra.mxu0 %v100
  %v188 = vpop.f32.mrf.mxu0
  %v189 = vadd.f32 0.0, %v188
  %190 = vmatmul.f32.gmra.mxu0 %v103
  %v191 = vpop.f32.mrf.mxu0
  %v192 = vadd.f32 0.0, %v191
  %193 = vmatmul.f32.gmra.mxu0 %v106
  %v194 = vpop.f32.mrf.mxu0
  %v195 = vadd.f32 0.0, %v194
  %196 = vmatmul.f32.gmra.mxu0 %v109
  %v197 = vpop.f32.mrf.mxu0
  %v198 = vadd.f32 0.0, %v197
  %199 = vmatmul.f32.gmra.mxu0 %v112
  %v200 = vpop.f32.mrf.mxu0
  %v201 = vadd.f32 0.0, %v200
  %202 = vmatmul.f32.gmra.mxu0 %v115
  %v203 = vpop.f32.mrf.mxu0
  %v204 = vadd.f32 0.0, %v203
  %205 = vmatmul.f32.gmra.mxu0 %v118
  %v206 = vpop.f32.mrf.mxu0
  %v207 = vadd.f32 0.0, %v206
  %208 = vmatmul.f32.gmra.mxu0 %v121
  %v209 = vpop.f32.mrf.mxu0
  %v210 = vadd.f32 0.0, %v209
  %211 = vmatmul.f32.gmra.mxu0 %v124
  %v212 = vpop.f32.mrf.mxu0
  %v213 = vadd.f32 0.0, %v212
  %214 = vmatmul.f32.gmra.mxu0 %v127
  %v215 = vpop.f32.mrf.mxu0
  %v216 = vadd.f32 0.0, %v215
  %217 = vmatmul.f32.gmra.mxu0 %v130
  %v218 = vpop.f32.mrf.mxu0
  %v219 = vadd.f32 0.0, %v218
  %220 = vmatmul.f32.gmra.mxu0 %v133
  %v221 = vpop.f32.mrf.mxu0
  %v222 = vadd.f32 0.0, %v221
  %223 = vdwg.mxu0
  %v224 = vld [vmem:[%s4] sm:$0x1]
  %v225 = vmul.f32 %v177, 2.0
  %v226 = vmul.f32 %v180, 2.0
  %v227 = vmul.f32 %v183, 2.0
  %v228 = vmul.f32 %v186, 2.0
  %v229 = vmul.f32 %v189, 2.0
  %v230 = vmul.f32 %v192, 2.0
  %v231 = vmul.f32 %v195, 2.0
  %v232 = vmul.f32 %v198, 2.0
  %v233 = vmul.f32 %v201, 2.0
  %v234 = vmul.f32 %v204, 2.0
  %v235 = vmul.f32 %v207, 2.0
  %v236 = vmul.f32 %v210, 2.0
  %v237 = vmul.f32 %v213, 2.0
  %v238 = vmul.f32 %v216, 2.0
  %v239 = vmul.f32 %v219, 2.0
  %v240 = vmul.f32 %v222, 2.0
  %v242 = vperm.slane %v224, 0
  %v244 = vsub.f32 %v242, %v225
  %v245 = vsub.f32 %v242, %v226
  %v246 = vsub.f32 %v242, %v227
  %v247 = vsub.f32 %v242, %v228
  %v248 = vsub.f32 %v242, %v229
  %v249 = vsub.f32 %v242, %v230
  %v250 = vsub.f32 %v242, %v231
  %v251 = vsub.f32 %v242, %v232
  %v252 = vsub.f32 %v242, %v233
  %v253 = vsub.f32 %v242, %v234
  %v254 = vsub.f32 %v242, %v235
  %v255 = vsub.f32 %v242, %v236
  %v256 = vsub.f32 %v242, %v237
  %v257 = vsub.f32 %v242, %v238
  %v258 = vsub.f32 %v242, %v239
  %v259 = vsub.f32 %v242, %v240
  %v260 = vlaneseq
  %v261 = vand.u32 %v260, 127
  %vm262 = vcmask 523264
  %v263 = vsel %vm262, %v244, inf
  %264 = vmin.xlane.f32.xlu0 %v263
  %v265 = vpop.xlane.xlu0 %264
  %v266 = vsel %vm262, %v245, inf
  %267 = vmin.xlane.f32.xlu0 %v266
  %v268 = vpop.xlane.xlu0 %267
  %v269 = vsel %vm262, %v246, inf
  %270 = vmin.xlane.f32.xlu0 %v269
  %v271 = vpop.xlane.xlu0 %270
  %v272 = vsel %vm262, %v247, inf
  %273 = vmin.xlane.f32.xlu0 %v272
  %v274 = vpop.xlane.xlu0 %273
  %v275 = vsel %vm262, %v248, inf
  %276 = vmin.xlane.f32.xlu0 %v275
  %v277 = vpop.xlane.xlu0 %276
  %v278 = vsel %vm262, %v249, inf
  %279 = vmin.xlane.f32.xlu0 %v278
  %v280 = vpop.xlane.xlu0 %279
  %v281 = vsel %vm262, %v250, inf
  %282 = vmin.xlane.f32.xlu0 %v281
  %v283 = vpop.xlane.xlu0 %282
  %v284 = vsel %vm262, %v251, inf
  %285 = vmin.xlane.f32.xlu0 %v284
  %v286 = vpop.xlane.xlu0 %285
  %v287 = vsel %vm262, %v252, inf
  %288 = vmin.xlane.f32.xlu0 %v287
  %v289 = vpop.xlane.xlu0 %288
  %v290 = vsel %vm262, %v253, inf
  %291 = vmin.xlane.f32.xlu0 %v290
  %v292 = vpop.xlane.xlu0 %291
  %v293 = vsel %vm262, %v254, inf
  %294 = vmin.xlane.f32.xlu0 %v293
  %v295 = vpop.xlane.xlu0 %294
  %v296 = vsel %vm262, %v255, inf
  %297 = vmin.xlane.f32.xlu0 %v296
  %v298 = vpop.xlane.xlu0 %297
  %v299 = vsel %vm262, %v256, inf
  %300 = vmin.xlane.f32.xlu0 %v299
  %v301 = vpop.xlane.xlu0 %300
  %v302 = vsel %vm262, %v257, inf
  %303 = vmin.xlane.f32.xlu0 %v302
  %v304 = vpop.xlane.xlu0 %303
  %v305 = vsel %vm262, %v258, inf
  %306 = vmin.xlane.f32.xlu0 %v305
  %v307 = vpop.xlane.xlu0 %306
  %v308 = vsel %vm262, %v259, inf
  %309 = vmin.xlane.f32.xlu0 %v308
  %v310 = vpop.xlane.xlu0 %309
  %vm311 = vcmp.eq.f32.partialorder %v244, %v265
  %vm312 = vcmp.eq.f32.partialorder %v245, %v268
  %vm313 = vcmp.eq.f32.partialorder %v246, %v271
  %vm314 = vcmp.eq.f32.partialorder %v247, %v274
  %vm315 = vcmp.eq.f32.partialorder %v248, %v277
  %vm316 = vcmp.eq.f32.partialorder %v249, %v280
  %vm317 = vcmp.eq.f32.partialorder %v250, %v283
  %vm318 = vcmp.eq.f32.partialorder %v251, %v286
  %vm319 = vcmp.eq.f32.partialorder %v252, %v289
  %vm320 = vcmp.eq.f32.partialorder %v253, %v292
  %vm321 = vcmp.eq.f32.partialorder %v254, %v295
  %vm322 = vcmp.eq.f32.partialorder %v255, %v298
  %vm323 = vcmp.eq.f32.partialorder %v256, %v301
  %vm324 = vcmp.eq.f32.partialorder %v257, %v304
  %vm325 = vcmp.eq.f32.partialorder %v258, %v307
  %vm326 = vcmp.eq.f32.partialorder %v259, %v310
  %v327 = vsel %vm311, %v261, 64
  %v328 = vsel %vm312, %v261, 64
  %v329 = vsel %vm313, %v261, 64
  %v330 = vsel %vm314, %v261, 64
  %v331 = vsel %vm315, %v261, 64
  %v332 = vsel %vm316, %v261, 64
  %v333 = vsel %vm317, %v261, 64
  %v334 = vsel %vm318, %v261, 64
  %v335 = vsel %vm319, %v261, 64
  %v336 = vsel %vm320, %v261, 64
  %v337 = vsel %vm321, %v261, 64
  %v338 = vsel %vm322, %v261, 64
  %v339 = vsel %vm323, %v261, 64
  %v340 = vsel %vm324, %v261, 64
  %v341 = vsel %vm325, %v261, 64
  %v342 = vsel %vm326, %v261, 64
  %v343 = vsel %vm262, %v327, 2147483647
  %v344 = vand.u32 %v343, 65535
  %v345 = vshra.s32 %v343, 16
  %v346 = vcvt.s32.f32 %v344
  %v347 = vcvt.s32.f32 %v345
  %348 = vmin.xlane.f32.xlu0 %v347
  %v349 = vpop.xlane.xlu0 %348
  %vm350 = vcmp.eq.f32.partialorder %v347, %v349
  %v351 = vsel %vm350, %v346, inf
  %352 = vmin.xlane.f32.xlu0 %v351
  %v353 = vpop.xlane.xlu0 %352
  %v354 = vcvt.f32.s32 %v353
  %v355 = vcvt.f32.s32 %v349
  %v356 = vshll.u32 %v355, 16
  %v357 = vadd.s32 %v356, %v354
  %v358 = vsel %vm262, %v328, 2147483647
  %v359 = vand.u32 %v358, 65535
  %v360 = vshra.s32 %v358, 16
  %v361 = vcvt.s32.f32 %v359
  %v362 = vcvt.s32.f32 %v360
  %363 = vmin.xlane.f32.xlu0 %v362
  %v364 = vpop.xlane.xlu0 %363
  %vm365 = vcmp.eq.f32.partialorder %v362, %v364
  %v366 = vsel %vm365, %v361, inf
  %367 = vmin.xlane.f32.xlu0 %v366
  %v368 = vpop.xlane.xlu0 %367
  %v369 = vcvt.f32.s32 %v368
  %v370 = vcvt.f32.s32 %v364
  %v371 = vshll.u32 %v370, 16
  %v372 = vadd.s32 %v371, %v369
  %v373 = vsel %vm262, %v329, 2147483647
  %v374 = vand.u32 %v373, 65535
  %v375 = vshra.s32 %v373, 16
  %v376 = vcvt.s32.f32 %v374
  %v377 = vcvt.s32.f32 %v375
  %378 = vmin.xlane.f32.xlu0 %v377
  %v379 = vpop.xlane.xlu0 %378
  %vm380 = vcmp.eq.f32.partialorder %v377, %v379
  %v381 = vsel %vm380, %v376, inf
  %382 = vmin.xlane.f32.xlu0 %v381
  %v383 = vpop.xlane.xlu0 %382
  %v384 = vcvt.f32.s32 %v383
  %v385 = vcvt.f32.s32 %v379
  %v386 = vshll.u32 %v385, 16
  %v387 = vadd.s32 %v386, %v384
  %v388 = vsel %vm262, %v330, 2147483647
  %v389 = vand.u32 %v388, 65535
  %v390 = vshra.s32 %v388, 16
  %v391 = vcvt.s32.f32 %v389
  %v392 = vcvt.s32.f32 %v390
  %393 = vmin.xlane.f32.xlu0 %v392
  %v394 = vpop.xlane.xlu0 %393
  %vm395 = vcmp.eq.f32.partialorder %v392, %v394
  %v396 = vsel %vm395, %v391, inf
  %397 = vmin.xlane.f32.xlu0 %v396
  %v398 = vpop.xlane.xlu0 %397
  %v399 = vcvt.f32.s32 %v398
  %v400 = vcvt.f32.s32 %v394
  %v401 = vshll.u32 %v400, 16
  %v402 = vadd.s32 %v401, %v399
  %v403 = vsel %vm262, %v331, 2147483647
  %v404 = vand.u32 %v403, 65535
  %v405 = vshra.s32 %v403, 16
  %v406 = vcvt.s32.f32 %v404
  %v407 = vcvt.s32.f32 %v405
  %408 = vmin.xlane.f32.xlu0 %v407
  %v409 = vpop.xlane.xlu0 %408
  %vm410 = vcmp.eq.f32.partialorder %v407, %v409
  %v411 = vsel %vm410, %v406, inf
  %412 = vmin.xlane.f32.xlu0 %v411
  %v413 = vpop.xlane.xlu0 %412
  %v414 = vcvt.f32.s32 %v413
  %v415 = vcvt.f32.s32 %v409
  %v416 = vshll.u32 %v415, 16
  %v417 = vadd.s32 %v416, %v414
  %v418 = vsel %vm262, %v332, 2147483647
  %v419 = vand.u32 %v418, 65535
  %v420 = vshra.s32 %v418, 16
  %v421 = vcvt.s32.f32 %v419
  %v422 = vcvt.s32.f32 %v420
  %423 = vmin.xlane.f32.xlu0 %v422
  %v424 = vpop.xlane.xlu0 %423
  %vm425 = vcmp.eq.f32.partialorder %v422, %v424
  %v426 = vsel %vm425, %v421, inf
  %427 = vmin.xlane.f32.xlu0 %v426
  %v428 = vpop.xlane.xlu0 %427
  %v429 = vcvt.f32.s32 %v428
  %v430 = vcvt.f32.s32 %v424
  %v431 = vshll.u32 %v430, 16
  %v432 = vadd.s32 %v431, %v429
  %v433 = vsel %vm262, %v333, 2147483647
  %v434 = vand.u32 %v433, 65535
  %v435 = vshra.s32 %v433, 16
  %v436 = vcvt.s32.f32 %v434
  %v437 = vcvt.s32.f32 %v435
  %438 = vmin.xlane.f32.xlu0 %v437
  %v439 = vpop.xlane.xlu0 %438
  %vm440 = vcmp.eq.f32.partialorder %v437, %v439
  %v441 = vsel %vm440, %v436, inf
  %442 = vmin.xlane.f32.xlu0 %v441
  %v443 = vpop.xlane.xlu0 %442
  %v444 = vcvt.f32.s32 %v443
  %v445 = vcvt.f32.s32 %v439
  %v446 = vshll.u32 %v445, 16
  %v447 = vadd.s32 %v446, %v444
  %v448 = vsel %vm262, %v334, 2147483647
  %v449 = vand.u32 %v448, 65535
  %v450 = vshra.s32 %v448, 16
  %v451 = vcvt.s32.f32 %v449
  %v452 = vcvt.s32.f32 %v450
  %453 = vmin.xlane.f32.xlu0 %v452
  %v454 = vpop.xlane.xlu0 %453
  %vm455 = vcmp.eq.f32.partialorder %v452, %v454
  %v456 = vsel %vm455, %v451, inf
  %457 = vmin.xlane.f32.xlu0 %v456
  %v458 = vpop.xlane.xlu0 %457
  %v459 = vcvt.f32.s32 %v458
  %v460 = vcvt.f32.s32 %v454
  %v461 = vshll.u32 %v460, 16
  %v462 = vadd.s32 %v461, %v459
  %v463 = vsel %vm262, %v335, 2147483647
  %v464 = vand.u32 %v463, 65535
  %v465 = vshra.s32 %v463, 16
  %v466 = vcvt.s32.f32 %v464
  %v467 = vcvt.s32.f32 %v465
  %468 = vmin.xlane.f32.xlu0 %v467
  %v469 = vpop.xlane.xlu0 %468
  %vm470 = vcmp.eq.f32.partialorder %v467, %v469
  %v471 = vsel %vm470, %v466, inf
  %472 = vmin.xlane.f32.xlu0 %v471
  %v473 = vpop.xlane.xlu0 %472
  %v474 = vcvt.f32.s32 %v473
  %v475 = vcvt.f32.s32 %v469
  %v476 = vshll.u32 %v475, 16
  %v477 = vadd.s32 %v476, %v474
  %v478 = vsel %vm262, %v336, 2147483647
  %v479 = vand.u32 %v478, 65535
  %v480 = vshra.s32 %v478, 16
  %v481 = vcvt.s32.f32 %v479
  %v482 = vcvt.s32.f32 %v480
  %483 = vmin.xlane.f32.xlu0 %v482
  %v484 = vpop.xlane.xlu0 %483
  %vm485 = vcmp.eq.f32.partialorder %v482, %v484
  %v486 = vsel %vm485, %v481, inf
  %487 = vmin.xlane.f32.xlu0 %v486
  %v488 = vpop.xlane.xlu0 %487
  %v489 = vcvt.f32.s32 %v488
  %v490 = vcvt.f32.s32 %v484
  %v491 = vshll.u32 %v490, 16
  %v492 = vadd.s32 %v491, %v489
  %v493 = vsel %vm262, %v337, 2147483647
  %v494 = vand.u32 %v493, 65535
  %v495 = vshra.s32 %v493, 16
  %v496 = vcvt.s32.f32 %v494
  %v497 = vcvt.s32.f32 %v495
  %498 = vmin.xlane.f32.xlu0 %v497
  %v499 = vpop.xlane.xlu0 %498
  %vm500 = vcmp.eq.f32.partialorder %v497, %v499
  %v501 = vsel %vm500, %v496, inf
  %502 = vmin.xlane.f32.xlu0 %v501
  %v503 = vpop.xlane.xlu0 %502
  %v504 = vcvt.f32.s32 %v503
  %v505 = vcvt.f32.s32 %v499
  %v506 = vshll.u32 %v505, 16
  %v507 = vadd.s32 %v506, %v504
  %v508 = vsel %vm262, %v338, 2147483647
  %v509 = vand.u32 %v508, 65535
  %v510 = vshra.s32 %v508, 16
  %v511 = vcvt.s32.f32 %v509
  %v512 = vcvt.s32.f32 %v510
  %513 = vmin.xlane.f32.xlu0 %v512
  %v514 = vpop.xlane.xlu0 %513
  %vm515 = vcmp.eq.f32.partialorder %v512, %v514
  %v516 = vsel %vm515, %v511, inf
  %517 = vmin.xlane.f32.xlu0 %v516
  %v518 = vpop.xlane.xlu0 %517
  %v519 = vcvt.f32.s32 %v518
  %v520 = vcvt.f32.s32 %v514
  %v521 = vshll.u32 %v520, 16
  %v522 = vadd.s32 %v521, %v519
  %v523 = vsel %vm262, %v339, 2147483647
  %v524 = vand.u32 %v523, 65535
  %v525 = vshra.s32 %v523, 16
  %v526 = vcvt.s32.f32 %v524
  %v527 = vcvt.s32.f32 %v525
  %528 = vmin.xlane.f32.xlu0 %v527
  %v529 = vpop.xlane.xlu0 %528
  %vm530 = vcmp.eq.f32.partialorder %v527, %v529
  %v531 = vsel %vm530, %v526, inf
  %532 = vmin.xlane.f32.xlu0 %v531
  %v533 = vpop.xlane.xlu0 %532
  %v534 = vcvt.f32.s32 %v533
  %v535 = vcvt.f32.s32 %v529
  %v536 = vshll.u32 %v535, 16
  %v537 = vadd.s32 %v536, %v534
  %v538 = vsel %vm262, %v340, 2147483647
  %v539 = vand.u32 %v538, 65535
  %v540 = vshra.s32 %v538, 16
  %v541 = vcvt.s32.f32 %v539
  %v542 = vcvt.s32.f32 %v540
  %543 = vmin.xlane.f32.xlu0 %v542
  %v544 = vpop.xlane.xlu0 %543
  %vm545 = vcmp.eq.f32.partialorder %v542, %v544
  %v546 = vsel %vm545, %v541, inf
  %547 = vmin.xlane.f32.xlu0 %v546
  %v548 = vpop.xlane.xlu0 %547
  %v549 = vcvt.f32.s32 %v548
  %v550 = vcvt.f32.s32 %v544
  %v551 = vshll.u32 %v550, 16
  %v552 = vadd.s32 %v551, %v549
  %v553 = vsel %vm262, %v341, 2147483647
  %v554 = vand.u32 %v553, 65535
  %v555 = vshra.s32 %v553, 16
  %v556 = vcvt.s32.f32 %v554
  %v557 = vcvt.s32.f32 %v555
  %558 = vmin.xlane.f32.xlu0 %v557
  %v559 = vpop.xlane.xlu0 %558
  %vm560 = vcmp.eq.f32.partialorder %v557, %v559
  %v561 = vsel %vm560, %v556, inf
  %562 = vmin.xlane.f32.xlu0 %v561
  %v563 = vpop.xlane.xlu0 %562
  %v564 = vcvt.f32.s32 %v563
  %v565 = vcvt.f32.s32 %v559
  %v566 = vshll.u32 %v565, 16
  %v567 = vadd.s32 %v566, %v564
  %v568 = vsel %vm262, %v342, 2147483647
  %v569 = vand.u32 %v568, 65535
  %v570 = vshra.s32 %v568, 16
  %v571 = vcvt.s32.f32 %v569
  %v572 = vcvt.s32.f32 %v570
  %573 = vmin.xlane.f32.xlu0 %v572
  %v574 = vpop.xlane.xlu0 %573
  %vm575 = vcmp.eq.f32.partialorder %v572, %v574
  %v576 = vsel %vm575, %v571, inf
  %577 = vmin.xlane.f32.xlu0 %v576
  %v578 = vpop.xlane.xlu0 %577
  %v579 = vcvt.f32.s32 %v578
  %v580 = vcvt.f32.s32 %v574
  %v581 = vshll.u32 %v580, 16
  %v582 = vadd.s32 %v581, %v579
  %vm583 = vcmask 7168
  %584 = vst.msk [vmem:[%s6] sm:$0xff] %vm583, %v357
  %585 = vst.msk [vmem:[%s6 + $0x8] sm:$0xff] %vm583, %v372
  %586 = vst.msk [vmem:[%s6 + $0x10] sm:$0xff] %vm583, %v387
  %587 = vst.msk [vmem:[%s6 + $0x18] sm:$0xff] %vm583, %v402
  %588 = vst.msk [vmem:[%s6 + $0x20] sm:$0xff] %vm583, %v417
  %589 = vst.msk [vmem:[%s6 + $0x28] sm:$0xff] %vm583, %v432
  %590 = vst.msk [vmem:[%s6 + $0x30] sm:$0xff] %vm583, %v447
  %591 = vst.msk [vmem:[%s6 + $0x38] sm:$0xff] %vm583, %v462
  %592 = vst.msk [vmem:[%s6 + $0x40] sm:$0xff] %vm583, %v477
  %593 = vst.msk [vmem:[%s6 + $0x48] sm:$0xff] %vm583, %v492
  %594 = vst.msk [vmem:[%s6 + $0x50] sm:$0xff] %vm583, %v507
  %595 = vst.msk [vmem:[%s6 + $0x58] sm:$0xff] %vm583, %v522
  %596 = vst.msk [vmem:[%s6 + $0x60] sm:$0xff] %vm583, %v537
  %597 = vst.msk [vmem:[%s6 + $0x68] sm:$0xff] %vm583, %v552
  %598 = vst.msk [vmem:[%s6 + $0x70] sm:$0xff] %vm583, %v567
  %599 = vst.msk [vmem:[%s6 + $0x78] sm:$0xff] %vm583, %v582
  %vm600 = vcmp.eq.s32.totalorder %v261, %v357
  %vm601 = vcmp.eq.s32.totalorder %v261, %v372
  %vm602 = vcmp.eq.s32.totalorder %v261, %v387
  %vm603 = vcmp.eq.s32.totalorder %v261, %v402
  %vm604 = vcmp.eq.s32.totalorder %v261, %v417
  %vm605 = vcmp.eq.s32.totalorder %v261, %v432
  %vm606 = vcmp.eq.s32.totalorder %v261, %v447
  %vm607 = vcmp.eq.s32.totalorder %v261, %v462
  %vm608 = vcmp.eq.s32.totalorder %v261, %v477
  %vm609 = vcmp.eq.s32.totalorder %v261, %v492
  %vm610 = vcmp.eq.s32.totalorder %v261, %v507
  %vm611 = vcmp.eq.s32.totalorder %v261, %v522
  %vm612 = vcmp.eq.s32.totalorder %v261, %v537
  %vm613 = vcmp.eq.s32.totalorder %v261, %v552
  %vm614 = vcmp.eq.s32.totalorder %v261, %v567
  %vm615 = vcmp.eq.s32.totalorder %v261, %v582
  %v616 = vsel %vm600, 1, 0
  %v617 = vsel %vm601, 1, 0
  %v618 = vsel %vm602, 1, 0
  %v619 = vsel %vm603, 1, 0
  %v620 = vsel %vm604, 1, 0
  %v621 = vsel %vm605, 1, 0
  %v622 = vsel %vm606, 1, 0
  %v623 = vsel %vm607, 1, 0
  %v624 = vsel %vm608, 1, 0
  %v625 = vsel %vm609, 1, 0
  %v626 = vsel %vm610, 1, 0
  %v627 = vsel %vm611, 1, 0
  %v628 = vsel %vm612, 1, 0
  %v629 = vsel %vm613, 1, 0
  %v630 = vsel %vm614, 1, 0
  %v631 = vsel %vm615, 1, 0
  %v632 = vcvt.s32.f32 %v616
  %v633 = vcvt.s32.f32 %v617
  %v634 = vcvt.s32.f32 %v618
  %v635 = vcvt.s32.f32 %v619
  %v636 = vcvt.s32.f32 %v620
  %v637 = vcvt.s32.f32 %v621
  %v638 = vcvt.s32.f32 %v622
  %v639 = vcvt.s32.f32 %v623
  %v640 = vcvt.s32.f32 %v624
  %v641 = vcvt.s32.f32 %v625
  %v642 = vcvt.s32.f32 %v626
  %v643 = vcvt.s32.f32 %v627
  %v644 = vcvt.s32.f32 %v628
  %v645 = vcvt.s32.f32 %v629
  %v646 = vcvt.s32.f32 %v630
  %v647 = vcvt.s32.f32 %v631
  %v648 = vld [vmem:[%s3] sm:$0xff]
  %v649 = vld [vmem:[%s3 + $0x8] sm:$0xff]
  %v650 = vld [vmem:[%s3 + $0x10] sm:$0xff]
  %v651 = vld [vmem:[%s3 + $0x18] sm:$0xff]
  %v652 = vld [vmem:[%s3 + $0x20] sm:$0xff]
  %v653 = vld [vmem:[%s3 + $0x28] sm:$0xff]
  %v654 = vld [vmem:[%s3 + $0x30] sm:$0xff]
  %v655 = vld [vmem:[%s3 + $0x38] sm:$0xff]
  %v657 = vsel %vm262, %v632, 0
  %v660 = vsel %vm262, %v633, 0
  %v663 = vsel %vm262, %v634, 0
  %v666 = vsel %vm262, %v635, 0
  %v669 = vsel %vm262, %v636, 0
  %v672 = vsel %vm262, %v637, 0
  %v675 = vsel %vm262, %v638, 0
  %v678 = vsel %vm262, %v639, 0
  %v681 = vsel %vm262, %v640, 0
  %v684 = vsel %vm262, %v641, 0
  %v687 = vsel %vm262, %v642, 0
  %v690 = vsel %vm262, %v643, 0
  %v693 = vsel %vm262, %v644, 0
  %v696 = vsel %vm262, %v645, 0
  %v699 = vsel %vm262, %v646, 0
  %v702 = vsel %vm262, %v647, 0
  %704 = vmatpush.msra.mxu0 0.0
  %705 = vmatpush.msra.mxu0 0.0
  %706 = vmatpush.msra.mxu0 0.0
  %707 = vmatpush.msra.mxu0 0.0
  %708 = vmatpush.msra.mxu0 0.0
  %709 = vmatpush.msra.mxu0 0.0
  %710 = vmatpush.msra.mxu0 0.0
  %711 = vmatpush.msra.mxu0 0.0
  %712 = vmatpush.msra.mxu0 %v655
  %713 = vmatpush.msra.mxu0 %v654
  %714 = vmatpush.msra.mxu0 %v653
  %715 = vmatpush.msra.mxu0 %v652
  %716 = vmatpush.msra.mxu0 %v651
  %717 = vmatpush.msra.mxu0 %v650
  %718 = vmatpush.msra.mxu0 %v649
  %719 = vmatpush.msra.mxu0 %v648
  %720 = vmatmul.f32.gmra.mxu0 %v657
  %v721 = vpop.f32.mrf.mxu0
  %v722 = vadd.f32 0.0, %v721
  %723 = vmatmul.f32.gmra.mxu0 %v660
  %v724 = vpop.f32.mrf.mxu0
  %v725 = vadd.f32 0.0, %v724
  %726 = vmatmul.f32.gmra.mxu0 %v663
  %v727 = vpop.f32.mrf.mxu0
  %v728 = vadd.f32 0.0, %v727
  %729 = vmatmul.f32.gmra.mxu0 %v666
  %v730 = vpop.f32.mrf.mxu0
  %v731 = vadd.f32 0.0, %v730
  %732 = vmatmul.f32.gmra.mxu0 %v669
  %v733 = vpop.f32.mrf.mxu0
  %v734 = vadd.f32 0.0, %v733
  %735 = vmatmul.f32.gmra.mxu0 %v672
  %v736 = vpop.f32.mrf.mxu0
  %v737 = vadd.f32 0.0, %v736
  %738 = vmatmul.f32.gmra.mxu0 %v675
  %v739 = vpop.f32.mrf.mxu0
  %v740 = vadd.f32 0.0, %v739
  %741 = vmatmul.f32.gmra.mxu0 %v678
  %v742 = vpop.f32.mrf.mxu0
  %v743 = vadd.f32 0.0, %v742
  %744 = vmatmul.f32.gmra.mxu0 %v681
  %v745 = vpop.f32.mrf.mxu0
  %v746 = vadd.f32 0.0, %v745
  %747 = vmatmul.f32.gmra.mxu0 %v684
  %v748 = vpop.f32.mrf.mxu0
  %v749 = vadd.f32 0.0, %v748
  %750 = vmatmul.f32.gmra.mxu0 %v687
  %v751 = vpop.f32.mrf.mxu0
  %v752 = vadd.f32 0.0, %v751
  %753 = vmatmul.f32.gmra.mxu0 %v690
  %v754 = vpop.f32.mrf.mxu0
  %v755 = vadd.f32 0.0, %v754
  %756 = vmatmul.f32.gmra.mxu0 %v693
  %v757 = vpop.f32.mrf.mxu0
  %v758 = vadd.f32 0.0, %v757
  %759 = vmatmul.f32.gmra.mxu0 %v696
  %v760 = vpop.f32.mrf.mxu0
  %v761 = vadd.f32 0.0, %v760
  %762 = vmatmul.f32.gmra.mxu0 %v699
  %v763 = vpop.f32.mrf.mxu0
  %v764 = vadd.f32 0.0, %v763
  %765 = vmatmul.f32.gmra.mxu0 %v702
  %v766 = vpop.f32.mrf.mxu0
  %v767 = vadd.f32 0.0, %v766
  %768 = vdwg.mxu0
  %769 = vst.msk [vmem:[%s5] sm:$0xff] %vm86, %v722
  %770 = vst.msk [vmem:[%s5 + $0x8] sm:$0xff] %vm86, %v725
  %771 = vst.msk [vmem:[%s5 + $0x10] sm:$0xff] %vm86, %v728
  %772 = vst.msk [vmem:[%s5 + $0x18] sm:$0xff] %vm86, %v731
  %773 = vst.msk [vmem:[%s5 + $0x20] sm:$0xff] %vm86, %v734
  %774 = vst.msk [vmem:[%s5 + $0x28] sm:$0xff] %vm86, %v737
  %775 = vst.msk [vmem:[%s5 + $0x30] sm:$0xff] %vm86, %v740
  %776 = vst.msk [vmem:[%s5 + $0x38] sm:$0xff] %vm86, %v743
  %777 = vst.msk [vmem:[%s5 + $0x40] sm:$0xff] %vm86, %v746
  %778 = vst.msk [vmem:[%s5 + $0x48] sm:$0xff] %vm86, %v749
  %779 = vst.msk [vmem:[%s5 + $0x50] sm:$0xff] %vm86, %v752
  %780 = vst.msk [vmem:[%s5 + $0x58] sm:$0xff] %vm86, %v755
  %781 = vst.msk [vmem:[%s5 + $0x60] sm:$0xff] %vm86, %v758
  %782 = vst.msk [vmem:[%s5 + $0x68] sm:$0xff] %vm86, %v761
  %783 = vst.msk [vmem:[%s5 + $0x70] sm:$0xff] %vm86, %v764
  %784 = vst.msk [vmem:[%s5 + $0x78] sm:$0xff] %vm86, %v767
  // Predicated region
  $region22: #{tpu_custom_call.1} parent=0 // pred_check
    _
  $region23: #{tpu_custom_call.1} parent=0 // pred_check_branch
    %786 = sbr.rel (0) target = $region25
  $region24: #{tpu_custom_call.1} parent=0 // pred_region
    _
  $region25: #{tpu_custom_call.1} parent=0 // pred_fallthru
    _
  // Predicated region
  $region26: #{tpu_custom_call.1} parent=0 // pred_check
    _
  $region27: #{tpu_custom_call.1} parent=0 // pred_check_branch
    %788 = sbr.rel (0) target = $region29
  $region28: #{tpu_custom_call.1} parent=0 // pred_region
    _
  $region29: #{tpu_custom_call.1} parent=0 // pred_fallthru
    _
  // Predicated region
  $region30: #{tpu_custom_call.1} parent=0 // pred_check
    _
  $region31: #{tpu_custom_call.1} parent=0 // pred_check_branch
    %790 = sbr.rel (0) target = $region33
  $region32: #{tpu_custom_call.1} parent=0 // pred_region
    _
  $region33: #{tpu_custom_call.1} parent=0 // pred_fallthru
    _
  // Predicated region
  $region34: #{tpu_custom_call.1} parent=0 // pred_check
    _
  $region35: #{tpu_custom_call.1} parent=0 // pred_check_branch
    %792 = sbr.rel (0) target = $region37
  $region36: #{tpu_custom_call.1} parent=0 // pred_region
    _
  $region37: #{tpu_custom_call.1} parent=0 // pred_fallthru
    _

</llo_original>
